<compile_context>
chip_gen: v6e
topology: v6e:2x2x1
jax: 0.10.0
libtpu: 0.0.40
codegen_flags: <defaults>
</compile_context>

<pallas_src>
import jax
import jax.numpy as jnp
from jax import lax
from jax.experimental import pallas as pl
from jax.experimental.pallas import tpu as pltpu


def _decode_kernel(ids_ref, emb_ref, h0_ref, c0_ref, wih_ref, whh_ref, b_ref,
                   wp_ref, bp_ref, pred_ref, hout_ref, cout_ref, h_sc, c_sc):
    """One fused decoder step; grid axis 0 iterates (sequentially) over time."""
    t = pl.program_id(0)
    T = pl.num_programs(0)
    B, H = h_sc.shape
    V = emb_ref.shape[0]

    # Load the initial state into the VMEM scratch carry on the first step.
    @pl.when(t == 0)
    def _():
        h_sc[...] = h0_ref[...]
        c_sc[...] = c0_ref[...]

    # ---- embedding lookup inside the kernel (resident table) ----
    # one-hot @ table == exact row gather, fully vectorized on the MXU.
    ids = ids_ref[t]                                             # [B, 1] int32
    onehot = (ids == lax.broadcasted_iota(jnp.int32, (B, V), 1))  # [B, V] bool
    x = jnp.dot(onehot.astype(emb_ref.dtype), emb_ref[...],
                preferred_element_type=jnp.float32)              # [B, D_in] f32

    h = h_sc[...]                                                # [B, H] f32
    c = c_sc[...]                                                # [B, H] f32

    # ---- LSTMCell: gates = x @ W_ih^T + h @ W_hh^T + (b_ih + b_hh) ----
    wdt = wih_ref.dtype                                          # f32 or bf16
    gates = (jnp.dot(x.astype(wdt), wih_ref[...],
                     preferred_element_type=jnp.float32)
             + jnp.dot(h.astype(wdt), whh_ref[...],
                       preferred_element_type=jnp.float32)
             + b_ref[...])                                       # [B, 4H] f32

    # Full-vreg-width activations (one sigmoid + one tanh over [B, 4H]);
    # slice only for the per-gate combine.  PyTorch gate order (i, f, g, o).
    sig = jax.nn.sigmoid(gates)
    tnh = jnp.tanh(gates)
    i_g = sig[:, 0 * H:1 * H]
    f_g = sig[:, 1 * H:2 * H]
    g_g = tnh[:, 2 * H:3 * H]
    o_g = sig[:, 3 * H:4 * H]

    c_new = f_g * c + i_g * g_g
    h_new = o_g * jnp.tanh(c_new)
    h_sc[...] = h_new
    c_sc[...] = c_new

    # ---- prediction head: relu(h) @ W_pred^T + b_pred ----
    pred = (jnp.dot(jnp.maximum(h_new, 0.0).astype(wdt), wp_ref[...],
                    preferred_element_type=jnp.float32)
            + bp_ref[...])                                       # [B, V] f32
    pred_ref[0] = pred.astype(pred_ref.dtype)

    # Final state is written exactly once, on the last step.
    @pl.when(t == T - 1)
    def _():
        hout_ref[...] = h_new.astype(hout_ref.dtype)
        cout_ref[...] = c_new.astype(cout_ref.dtype)


def text_decoder_decode(params, input_state, token_ids):
    """Fused T-step teacher-forced decode.

    token_ids: int32 [T, B].  Step t computes exactly
    TextDecoder.forward(state_t, token_ids[t]).  Returns predictions
    [T, B, V] and the final (h, c).
    """
    h0, c0 = input_state
    T, B = token_ids.shape
    H = h0.shape[-1]
    V, D = params["embedding"].shape
    Vp = params["w_pred_t"].shape[-1]

    ids3 = token_ids.reshape(T, B, 1).astype(jnp.int32)

    const2 = lambda t: (0, 0)        # resident 2-D operand (never re-fetched)

    grid_spec = pltpu.PrefetchScalarGridSpec(
        num_scalar_prefetch=0,
        grid=(T,),
        in_specs=[
            pl.BlockSpec((T, B, 1), lambda t: (0, 0, 0)),   # all token ids (resident)
            pl.BlockSpec((V, D), const2),                   # embedding table
            pl.BlockSpec((B, H), const2),                   # h0
            pl.BlockSpec((B, H), const2),                   # c0
            pl.BlockSpec((D, 4 * H), const2),               # W_ih^T
            pl.BlockSpec((H, 4 * H), const2),               # W_hh^T
            pl.BlockSpec((1, 4 * H), const2),               # b_ih + b_hh
            pl.BlockSpec((H, Vp), const2),                  # W_pred^T
            pl.BlockSpec((1, Vp), const2),                  # b_pred
        ],
        out_specs=(
            pl.BlockSpec((1, B, Vp), lambda t: (t, 0, 0)),  # per-step predictions
            pl.BlockSpec((B, H), const2),                   # final h (written once)
            pl.BlockSpec((B, H), const2),                   # final c (written once)
        ),
        scratch_shapes=[pltpu.VMEM((B, H), jnp.float32),    # h carry
                        pltpu.VMEM((B, H), jnp.float32)],   # c carry
    )

    preds, h, c = pl.pallas_call(
        _decode_kernel,
        out_shape=(jax.ShapeDtypeStruct((T, B, Vp), jnp.float32),
                   jax.ShapeDtypeStruct((B, H), jnp.float32),
                   jax.ShapeDtypeStruct((B, H), jnp.float32)),
        grid_spec=grid_spec,
        # The time axis is a sequential recurrence (state carried in scratch).
        # NOTE: at larger B / V, add a leading 'parallel' batch or vocab-tile
        # axis (uses v7x's 2nd TensorCore) and tile W_pred over V against
        # v7x's 64 MiB VMEM; not needed at these toy sizes.
        compiler_params=pltpu.CompilerParams(
            dimension_semantics=("arbitrary",)),
    )(ids3, params["embedding"], h0, c0,
      params["w_ih_t"], params["w_hh_t"], params["b_gates"],
      params["w_pred_t"], params["b_pred"])
    return preds, (h, c)


def text_decoder_forward(params, input_state, current_token_id):
    """Equivalent of TextDecoder.forward (single step == T=1 fused decode)."""
    preds, state = text_decoder_decode(params, input_state,
                                       current_token_id[None, :])
    return preds[0], state


def init_params(key, input_size, state_size, vocab_size):
    """Deterministic synthetic init mirroring TextDecoder.init_weights()."""
    k = jax.random.split(key, 6)
    emb = jax.random.uniform(k[0], (vocab_size, input_size), jnp.float32, -0.1, 0.1)
    bound = 1.0 / (state_size ** 0.5)           # PyTorch LSTMCell default init
    w_ih = jax.random.uniform(k[1], (4 * state_size, input_size), jnp.float32, -bound, bound)
    w_hh = jax.random.uniform(k[2], (4 * state_size, state_size), jnp.float32, -bound, bound)
    b_ih = jax.random.uniform(k[3], (4 * state_size,), jnp.float32, -bound, bound)
    b_hh = jax.random.uniform(k[4], (4 * state_size,), jnp.float32, -bound, bound)
    w_pred = jax.random.uniform(k[5], (vocab_size, state_size), jnp.float32, -0.1, 0.1)
    b_pred = jnp.zeros((vocab_size,), jnp.float32)
    return dict(
        embedding=emb,                                        # [V, D_in]
        w_ih_t=w_ih.T,                                        # [D_in, 4H]
        w_hh_t=w_hh.T,                                        # [H, 4H]
        b_gates=(b_ih + b_hh).reshape(1, 4 * state_size),     # [1, 4H]
        w_pred_t=w_pred.T,                                    # [H, V]
        b_pred=b_pred.reshape(1, vocab_size),                 # [1, V]
    )


def cast_weights(params, dtype):
    """Cast matmul weights (not biases / element-wise path) to `dtype`."""
    out = dict(params)
    for k in ("embedding", "w_ih_t", "w_hh_t", "w_pred_t"):
        out[k] = params[k].astype(dtype)
    return out


def reference_forward(params, input_state, current_token_id):
    """Pure-JAX f32 reference for one TextDecoder.forward step."""
    h0, c0 = input_state
    x = params["embedding"][current_token_id]
    gates = x @ params["w_ih_t"] + h0 @ params["w_hh_t"] + params["b_gates"]
    H = h0.shape[-1]
    i_g = jax.nn.sigmoid(gates[:, 0 * H:1 * H])
    f_g = jax.nn.sigmoid(gates[:, 1 * H:2 * H])
    g_g = jnp.tanh(gates[:, 2 * H:3 * H])
    o_g = jax.nn.sigmoid(gates[:, 3 * H:4 * H])
    c_new = f_g * c0 + i_g * g_g
    h_new = o_g * jnp.tanh(c_new)
    pred = jnp.maximum(h_new, 0.0) @ params["w_pred_t"] + params["b_pred"]
    return pred, (h_new, c_new)


def reference_decode(params, input_state, token_ids):
    h, c = input_state
    preds = []
    for t in range(token_ids.shape[0]):
        p, (h, c) = reference_forward(params, (h, c), token_ids[t])
        preds.append(p)
    return jnp.stack(preds, axis=0), (h, c)


if __name__ == "__main__":
    input_size = 32
    state_size = 32
    vocab_size = 128
    batch = 8
    seq_len = 8

    key = jax.random.PRNGKey(0)
    pkey, tkey = jax.random.split(key)
    params = init_params(pkey, input_size, state_size, vocab_size)

    token_seq = jax.random.randint(tkey, (seq_len, batch), 0, vocab_size,
                                   dtype=jnp.int32)
    # dummy_input_state: zero h and c
    h0 = jnp.zeros((batch, state_size), jnp.float32)
    c0 = jnp.zeros((batch, state_size), jnp.float32)

    # --- single-step check (exact TextDecoder.forward semantics), f32 ---
    pred, (h, c) = text_decoder_forward(params, (h0, c0), token_seq[0])
    jax.block_until_ready((pred, h, c))
    ref_pred, (ref_h, ref_c) = reference_forward(params, (h0, c0), token_seq[0])
    assert jnp.allclose(pred, ref_pred, atol=2e-5), "single-step prediction mismatch"
    assert jnp.allclose(h, ref_h, atol=2e-5), "single-step h mismatch"
    assert jnp.allclose(c, ref_c, atol=2e-5), "single-step c mismatch"

    # --- fused T-step decode: one pallas_call for the whole sequence, f32 ---
    preds, (hT, cT) = text_decoder_decode(params, (h0, c0), token_seq)
    jax.block_until_ready((preds, hT, cT))
    ref_preds, (ref_hT, ref_cT) = reference_decode(params, (h0, c0), token_seq)
    assert jnp.allclose(preds, ref_preds, atol=1e-4), "sequence prediction mismatch"
    assert jnp.allclose(hT, ref_hT, atol=1e-4), "final h mismatch"
    assert jnp.allclose(cT, ref_cT, atol=1e-4), "final c mismatch"

    # --- bf16 weights (v6e/v7x MXU path; f32 accumulate, f32 gate math) ---
    params_bf16 = cast_weights(params, jnp.bfloat16)
    preds16, (h16, c16) = text_decoder_decode(params_bf16, (h0, c0), token_seq)
    jax.block_until_ready((preds16, h16, c16))
    assert jnp.allclose(preds16, ref_preds, atol=5e-2), "bf16 prediction mismatch"
    assert jnp.allclose(h16, ref_hT, atol=5e-2), "bf16 h mismatch"
    assert jnp.allclose(c16, ref_cT, atol=5e-2), "bf16 c mismatch"

    print("KERNEL_OK")
</pallas_src>

<mosaic_0001>
module attributes {stable_mosaic.version = 11 : i64} {
  func.func @_decode_kernel(%arg0: i32, %arg1: memref<1x8x1xi32, #tpu.memory_space<vmem>>, %arg2: memref<128x32xf32, #tpu.memory_space<vmem>>, %arg3: memref<8x32xf32, #tpu.memory_space<vmem>>, %arg4: memref<8x32xf32, #tpu.memory_space<vmem>>, %arg5: memref<32x128xf32, #tpu.memory_space<vmem>>, %arg6: memref<32x128xf32, #tpu.memory_space<vmem>>, %arg7: memref<1x128xf32, #tpu.memory_space<vmem>>, %arg8: memref<32x128xf32, #tpu.memory_space<vmem>>, %arg9: memref<1x128xf32, #tpu.memory_space<vmem>>, %arg10: memref<1x8x128xf32, #tpu.memory_space<vmem>>, %arg11: memref<8x32xf32, #tpu.memory_space<vmem>>, %arg12: memref<8x32xf32, #tpu.memory_space<vmem>>, %arg13: memref<8x32xf32, #tpu.memory_space<vmem>>, %arg14: memref<8x32xf32, #tpu.memory_space<vmem>>) attributes {dimension_semantics = [#tpu.dimension_semantics<arbitrary>], iteration_bounds = array<i64: 1>, scalar_prefetch = 0 : i64, scratch_operands = 2 : i64, tpu.core_type = #tpu.core_type<tc>, window_params = [{pipeline_mode = #tpu.pipeline_mode<synchronous>, transform_indices = @transform_0, window_bounds = array<i64: 1, 8, 1>}, {pipeline_mode = #tpu.pipeline_mode<synchronous>, transform_indices = @transform_1, window_bounds = array<i64: 128, 32>}, {pipeline_mode = #tpu.pipeline_mode<synchronous>, transform_indices = @transform_2, window_bounds = array<i64: 8, 32>}, {pipeline_mode = #tpu.pipeline_mode<synchronous>, transform_indices = @transform_3, window_bounds = array<i64: 8, 32>}, {pipeline_mode = #tpu.pipeline_mode<synchronous>, transform_indices = @transform_4, window_bounds = array<i64: 32, 128>}, {pipeline_mode = #tpu.pipeline_mode<synchronous>, transform_indices = @transform_5, window_bounds = array<i64: 32, 128>}, {pipeline_mode = #tpu.pipeline_mode<synchronous>, transform_indices = @transform_6, window_bounds = array<i64: 1, 128>}, {pipeline_mode = #tpu.pipeline_mode<synchronous>, transform_indices = @transform_7, window_bounds = array<i64: 32, 128>}, {pipeline_mode = #tpu.pipeline_mode<synchronous>, transform_indices = @transform_8, window_bounds = array<i64: 1, 128>}, {transform_indices = @transform_9, window_bounds = array<i64: 1, 8, 128>}, {pipeline_mode = #tpu.pipeline_mode<synchronous>, transform_indices = @transform_10, window_bounds = array<i64: 8, 32>}, {pipeline_mode = #tpu.pipeline_mode<synchronous>, transform_indices = @transform_11, window_bounds = array<i64: 8, 32>}]} {
    %c0_i32 = arith.constant 0 : i32
    %0 = arith.cmpi eq, %arg0, %c0_i32 : i32
    %1 = arith.extui %0 : i1 to i32
    %c0_i32_0 = arith.constant 0 : i32
    %2 = arith.cmpi ne, %1, %c0_i32_0 : i32
    scf.if %2 {
      %c0_32 = arith.constant 0 : index
      %c0_33 = arith.constant 0 : index
      %53 = vector.load %arg3[%c0_32, %c0_33] : memref<8x32xf32, #tpu.memory_space<vmem>>, vector<8x32xf32>
      %c0_34 = arith.constant 0 : index
      %c0_35 = arith.constant 0 : index
      %54 = vector.load %arg13[%c0_34, %c0_35] : memref<8x32xf32, #tpu.memory_space<vmem>>, vector<8x32xf32>
      tpu.vector_store %arg13[%c0_34, %c0_35], %53 {strides = array<i32>} : memref<8x32xf32, #tpu.memory_space<vmem>>, vector<8x32xf32>,
      %c0_36 = arith.constant 0 : index
      %c0_37 = arith.constant 0 : index
      %55 = vector.load %arg4[%c0_36, %c0_37] : memref<8x32xf32, #tpu.memory_space<vmem>>, vector<8x32xf32>
      %c0_38 = arith.constant 0 : index
      %c0_39 = arith.constant 0 : index
      %56 = vector.load %arg14[%c0_38, %c0_39] : memref<8x32xf32, #tpu.memory_space<vmem>>, vector<8x32xf32>
      tpu.vector_store %arg14[%c0_38, %c0_39], %55 {strides = array<i32>} : memref<8x32xf32, #tpu.memory_space<vmem>>, vector<8x32xf32>,
    } else {
    }
    %3 = arith.index_cast %arg0 : i32 to index
    %c0 = arith.constant 0 : index
    %c0_1 = arith.constant 0 : index
    %4 = vector.load %arg1[%3, %c0, %c0_1] : memref<1x8x1xi32, #tpu.memory_space<vmem>>, vector<1x8x1xi32>
    %5 = vector.shape_cast %4 : vector<1x8x1xi32> to vector<8x1xi32>
    %6 = tpu.iota {dimensions = array<i32: 1>} : vector<8x128xi32>
    %7 = vector.broadcast %5 : vector<8x1xi32> to vector<8x128xi32>
    %8 = arith.cmpi eq, %7, %6 : vector<8x128xi32>
    %9 = arith.extui %8 : vector<8x128xi1> to vector<8x128xi32>
    %10 = arith.sitofp %9 : vector<8x128xi32> to vector<8x128xf32>
    %c0_2 = arith.constant 0 : index
    %c0_3 = arith.constant 0 : index
    %11 = vector.load %arg2[%c0_2, %c0_3] : memref<128x32xf32, #tpu.memory_space<vmem>>, vector<128x32xf32>
    %cst = arith.constant dense<0.000000e+00> : vector<8x32xf32>
    %12 = tpu.matmul %10, %11, %cst {dimension_numbers = #tpu.dot_dimension_numbers<[1], [0], [0], [1], [0, 0, 1, 1], [], []>} : vector<8x128xf32>, vector<128x32xf32>, vector<8x32xf32> -> vector<8x32xf32>
    %c0_4 = arith.constant 0 : index
    %c0_5 = arith.constant 0 : index
    %13 = vector.load %arg13[%c0_4, %c0_5] : memref<8x32xf32, #tpu.memory_space<vmem>>, vector<8x32xf32>
    %c0_6 = arith.constant 0 : index
    %c0_7 = arith.constant 0 : index
    %14 = vector.load %arg14[%c0_6, %c0_7] : memref<8x32xf32, #tpu.memory_space<vmem>>, vector<8x32xf32>
    %c0_8 = arith.constant 0 : index
    %c0_9 = arith.constant 0 : index
    %15 = vector.load %arg5[%c0_8, %c0_9] : memref<32x128xf32, #tpu.memory_space<vmem>>, vector<32x128xf32>
    %cst_10 = arith.constant dense<0.000000e+00> : vector<8x128xf32>
    %16 = tpu.matmul %12, %15, %cst_10 {dimension_numbers = #tpu.dot_dimension_numbers<[1], [0], [0], [1], [0, 0, 1, 1], [], []>} : vector<8x32xf32>, vector<32x128xf32>, vector<8x128xf32> -> vector<8x128xf32>
    %c0_11 = arith.constant 0 : index
    %c0_12 = arith.constant 0 : index
    %17 = vector.load %arg6[%c0_11, %c0_12] : memref<32x128xf32, #tpu.memory_space<vmem>>, vector<32x128xf32>
    %cst_13 = arith.constant dense<0.000000e+00> : vector<8x128xf32>
    %18 = tpu.matmul %13, %17, %cst_13 {dimension_numbers = #tpu.dot_dimension_numbers<[1], [0], [0], [1], [0, 0, 1, 1], [], []>} : vector<8x32xf32>, vector<32x128xf32>, vector<8x128xf32> -> vector<8x128xf32>
    %19 = arith.addf %16, %18 : vector<8x128xf32>
    %c0_14 = arith.constant 0 : index
    %c0_15 = arith.constant 0 : index
    %20 = vector.load %arg7[%c0_14, %c0_15] : memref<1x128xf32, #tpu.memory_space<vmem>>, vector<1x128xf32>
    %21 = vector.broadcast %20 : vector<1x128xf32> to vector<8x128xf32>
    %22 = arith.addf %19, %21 : vector<8x128xf32>
    %23 = arith.negf %22 : vector<8x128xf32>
    %24 = math.exp %23 : vector<8x128xf32>
    %cst_16 = arith.constant 1.000000e+00 : f32
    %25 = vector.broadcast %cst_16 : f32 to vector<8x128xf32>
    %26 = arith.addf %25, %24 : vector<8x128xf32>
    %27 = arith.divf %25, %26 : vector<8x128xf32>
    %28 = math.tanh %22 : vector<8x128xf32>
    %29 = vector.extract_strided_slice %27 {offsets = [0, 0], sizes = [8, 32], strides = [1, 1]} : vector<8x128xf32> to vector<8x32xf32>
    %30 = vector.extract_strided_slice %27 {offsets = [0, 32], sizes = [8, 32], strides = [1, 1]} : vector<8x128xf32> to vector<8x32xf32>
    %31 = vector.extract_strided_slice %28 {offsets = [0, 64], sizes = [8, 32], strides = [1, 1]} : vector<8x128xf32> to vector<8x32xf32>
    %32 = vector.extract_strided_slice %27 {offsets = [0, 96], sizes = [8, 32], strides = [1, 1]} : vector<8x128xf32> to vector<8x32xf32>
    %33 = arith.mulf %30, %14 : vector<8x32xf32>
    %34 = arith.mulf %29, %31 : vector<8x32xf32>
    %35 = arith.addf %33, %34 : vector<8x32xf32>
    %36 = math.tanh %35 : vector<8x32xf32>
    %37 = arith.mulf %32, %36 : vector<8x32xf32>
    %c0_17 = arith.constant 0 : index
    %c0_18 = arith.constant 0 : index
    %38 = vector.load %arg13[%c0_17, %c0_18] : memref<8x32xf32, #tpu.memory_space<vmem>>, vector<8x32xf32>
    tpu.vector_store %arg13[%c0_17, %c0_18], %37 {strides = array<i32>} : memref<8x32xf32, #tpu.memory_space<vmem>>, vector<8x32xf32>,
    %c0_19 = arith.constant 0 : index
    %c0_20 = arith.constant 0 : index
    %39 = vector.load %arg14[%c0_19, %c0_20] : memref<8x32xf32, #tpu.memory_space<vmem>>, vector<8x32xf32>
    tpu.vector_store %arg14[%c0_19, %c0_20], %35 {strides = array<i32>} : memref<8x32xf32, #tpu.memory_space<vmem>>, vector<8x32xf32>,
    %cst_21 = arith.constant 0.000000e+00 : f32
    %40 = vector.broadcast %cst_21 : f32 to vector<8x32xf32>
    %41 = arith.maximumf %37, %40 : vector<8x32xf32>
    %c0_22 = arith.constant 0 : index
    %c0_23 = arith.constant 0 : index
    %42 = vector.load %arg8[%c0_22, %c0_23] : memref<32x128xf32, #tpu.memory_space<vmem>>, vector<32x128xf32>
    %cst_24 = arith.constant dense<0.000000e+00> : vector<8x128xf32>
    %43 = tpu.matmul %41, %42, %cst_24 {dimension_numbers = #tpu.dot_dimension_numbers<[1], [0], [0], [1], [0, 0, 1, 1], [], []>} : vector<8x32xf32>, vector<32x128xf32>, vector<8x128xf32> -> vector<8x128xf32>
    %c0_25 = arith.constant 0 : index
    %c0_26 = arith.constant 0 : index
    %44 = vector.load %arg9[%c0_25, %c0_26] : memref<1x128xf32, #tpu.memory_space<vmem>>, vector<1x128xf32>
    %45 = vector.broadcast %44 : vector<1x128xf32> to vector<8x128xf32>
    %46 = arith.addf %43, %45 : vector<8x128xf32>
    %c0_27 = arith.constant 0 : index
    %c0_28 = arith.constant 0 : index
    %c0_29 = arith.constant 0 : index
    %47 = vector.load %arg10[%c0_27, %c0_28, %c0_29] : memref<1x8x128xf32, #tpu.memory_space<vmem>>, vector<1x8x128xf32>
    %48 = vector.shape_cast %47 : vector<1x8x128xf32> to vector<8x128xf32>
    %49 = vector.shape_cast %46 : vector<8x128xf32> to vector<1x8x128xf32>
    tpu.vector_store %arg10[%c0_27, %c0_28, %c0_29], %49 {strides = array<i32>} : memref<1x8x128xf32, #tpu.memory_space<vmem>>, vector<1x8x128xf32>,
    %c0_i32_30 = arith.constant 0 : i32
    %50 = arith.cmpi eq, %arg0, %c0_i32_30 : i32
    %51 = arith.extui %50 : i1 to i32
    %c0_i32_31 = arith.constant 0 : i32
    %52 = arith.cmpi ne, %51, %c0_i32_31 : i32
    scf.if %52 {
      %c0_32 = arith.constant 0 : index
      %c0_33 = arith.constant 0 : index
      %53 = vector.load %arg11[%c0_32, %c0_33] : memref<8x32xf32, #tpu.memory_space<vmem>>, vector<8x32xf32>
      tpu.vector_store %arg11[%c0_32, %c0_33], %37 {strides = array<i32>} : memref<8x32xf32, #tpu.memory_space<vmem>>, vector<8x32xf32>,
      %c0_34 = arith.constant 0 : index
      %c0_35 = arith.constant 0 : index
      %54 = vector.load %arg12[%c0_34, %c0_35] : memref<8x32xf32, #tpu.memory_space<vmem>>, vector<8x32xf32>
      tpu.vector_store %arg12[%c0_34, %c0_35], %35 {strides = array<i32>} : memref<8x32xf32, #tpu.memory_space<vmem>>, vector<8x32xf32>,
    } else {
    }
    return
  }
  func.func @transform_0(%arg0: i32) -> (i32, i32, i32) {
    %c0_i32 = arith.constant 0 : i32
    %c0_i32_0 = arith.constant 0 : i32
    %c0_i32_1 = arith.constant 0 : i32
    %c0_i32_2 = arith.constant 0 : i32
    return %c0_i32, %c0_i32_0, %c0_i32_1 : i32, i32, i32
  }
  func.func @transform_1(%arg0: i32) -> (i32, i32) {
    %c0_i32 = arith.constant 0 : i32
    %c0_i32_0 = arith.constant 0 : i32
    %c0_i32_1 = arith.constant 0 : i32
    return %c0_i32, %c0_i32_0 : i32, i32
  }
  func.func @transform_2(%arg0: i32) -> (i32, i32) {
    %c0_i32 = arith.constant 0 : i32
    %c0_i32_0 = arith.constant 0 : i32
    %c0_i32_1 = arith.constant 0 : i32
    return %c0_i32, %c0_i32_0 : i32, i32
  }
  func.func @transform_3(%arg0: i32) -> (i32, i32) {
    %c0_i32 = arith.constant 0 : i32
    %c0_i32_0 = arith.constant 0 : i32
    %c0_i32_1 = arith.constant 0 : i32
    return %c0_i32, %c0_i32_0 : i32, i32
  }
  func.func @transform_4(%arg0: i32) -> (i32, i32) {
    %c0_i32 = arith.constant 0 : i32
    %c0_i32_0 = arith.constant 0 : i32
    %c0_i32_1 = arith.constant 0 : i32
    return %c0_i32, %c0_i32_0 : i32, i32
  }
  func.func @transform_5(%arg0: i32) -> (i32, i32) {
    %c0_i32 = arith.constant 0 : i32
    %c0_i32_0 = arith.constant 0 : i32
    %c0_i32_1 = arith.constant 0 : i32
    return %c0_i32, %c0_i32_0 : i32, i32
  }
  func.func @transform_6(%arg0: i32) -> (i32, i32) {
    %c0_i32 = arith.constant 0 : i32
    %c0_i32_0 = arith.constant 0 : i32
    %c0_i32_1 = arith.constant 0 : i32
    return %c0_i32, %c0_i32_0 : i32, i32
  }
  func.func @transform_7(%arg0: i32) -> (i32, i32) {
    %c0_i32 = arith.constant 0 : i32
    %c0_i32_0 = arith.constant 0 : i32
    %c0_i32_1 = arith.constant 0 : i32
    return %c0_i32, %c0_i32_0 : i32, i32
  }
  func.func @transform_8(%arg0: i32) -> (i32, i32) {
    %c0_i32 = arith.constant 0 : i32
    %c0_i32_0 = arith.constant 0 : i32
    %c0_i32_1 = arith.constant 0 : i32
    return %c0_i32, %c0_i32_0 : i32, i32
  }
  func.func @transform_9(%arg0: i32) -> (i32, i32, i32) {
    %c0_i32 = arith.constant 0 : i32
    %c0_i32_0 = arith.constant 0 : i32
    %c0_i32_1 = arith.constant 0 : i32
    return %arg0, %c0_i32, %c0_i32_0 : i32, i32, i32
  }
  func.func @transform_10(%arg0: i32) -> (i32, i32) {
    %c0_i32 = arith.constant 0 : i32
    %c0_i32_0 = arith.constant 0 : i32
    %c0_i32_1 = arith.constant 0 : i32
    return %c0_i32, %c0_i32_0 : i32, i32
  }
  func.func @transform_11(%arg0: i32) -> (i32, i32) {
    %c0_i32 = arith.constant 0 : i32
    %c0_i32_0 = arith.constant 0 : i32
    %c0_i32_1 = arith.constant 0 : i32
    return %c0_i32, %c0_i32_0 : i32, i32
  }
}

</mosaic_0001>

<llo_original>
// kernel: tpu_custom_call.1
$region0: #{tpu_custom_call.1}
  #allocation0 [shape = 'u32[]', space=smem, size = 0x4, offset = 0x4, fixed_abs, tag = 'smem constant byte address 0x4 - core index']
  #allocation1 [shape = 'u32[144,128]{1,0:T(1,128)}', space=vmem, size = 0x12000, scoped, tag = 'internal scratch']
  #allocation2 [shape = 'f32[8,32]{1,0:T(8,128)}', space=vmem, size = 0x1000, scoped, tag = 'scratch operand']
  #allocation3 [shape = 'f32[8,32]{1,0:T(8,128)}', space=vmem, size = 0x1000, scoped, tag = 'scratch operand']
  %s0 = inlined_call_operand.vmem [shape: s32[1,8,1], index: 0, kind: input, shape index: {}]
  %s1 = inlined_call_operand.vmem [shape: f32[128,32], index: 1, kind: input, shape index: {}]
  %s2 = inlined_call_operand.vmem [shape: f32[8,32], index: 2, kind: input, shape index: {}]
  %s3 = inlined_call_operand.vmem [shape: f32[8,32], index: 3, kind: input, shape index: {}]
  %s4 = inlined_call_operand.vmem [shape: f32[32,128], index: 4, kind: input, shape index: {}]
  %s5 = inlined_call_operand.vmem [shape: f32[32,128], index: 5, kind: input, shape index: {}]
  %s6 = inlined_call_operand.vmem [shape: f32[1,128], index: 6, kind: input, shape index: {}]
  %s7 = inlined_call_operand.vmem [shape: f32[32,128], index: 7, kind: input, shape index: {}]
  %s8 = inlined_call_operand.vmem [shape: f32[1,128], index: 8, kind: input, shape index: {}]
  %s9 = inlined_call_operand.hbm [shape: f32[1,8,128], index: 9, kind: output, shape index: {0}]
  %s10 = inlined_call_operand.hbm [shape: f32[8,32], index: 10, kind: output, shape index: {1}]
  %s11 = inlined_call_operand.hbm [shape: f32[8,32], index: 11, kind: output, shape index: {2}]
  %12 = xla_tuple %s9, %s10, %s11
  %s13 = sld [smem:[#allocation0]]
  $region70: #{tpu_custom_call.1} parent=0
    _
  %s15 = ssub.s32 1, %s13
  %s16 = scalar_select 0, %s15, %s13
  $region1: #{tpu_custom_call.1} parent=0
    #allocation4 [shape = 'u8[4096]{0}', space=vmem, size = 0x1000, scoped, tag = 'output window, operand 0, single buffered']
    #allocation5 [shape = 's32[1]{0}', space=sflag, size = 0x4, scoped, tag = 'scoped memory for tpu_custom_call.1']
    #allocation6 [shape = 'u8[4096]{0}', space=vmem, size = 0x1000, scoped, tag = 'output window, operand 1, single buffered']
    #allocation7 [shape = 's32[1]{0}', space=sflag, size = 0x4, scoped, tag = 'scoped memory for tpu_custom_call.1']
    #allocation8 [shape = 'u8[4096]{0}', space=vmem, size = 0x1000, scoped, tag = 'output window, operand 2, single buffered']
    %17 = vsyncpa [#allocation5], 0
    %18 = vsyncpa [#allocation7], 0
    // Predicated region
    $region2: #{tpu_custom_call.1} parent=1 // pred_check
      _
    $region3: #{tpu_custom_call.1} parent=1 // pred_check_branch
      %20 = sbr.rel (0) target = $region5
    $region4: #{tpu_custom_call.1} parent=1 // pred_region
      _
    $region5: #{tpu_custom_call.1} parent=1 // pred_fallthru
      _
    // Predicated region
    $region6: #{tpu_custom_call.1} parent=1 // pred_check
      _
    $region7: #{tpu_custom_call.1} parent=1 // pred_check_branch
      %22 = sbr.rel (0) target = $region9
    $region8: #{tpu_custom_call.1} parent=1 // pred_region
      _
    $region9: #{tpu_custom_call.1} parent=1 // pred_fallthru
      _
    // Predicated region
    $region10: #{tpu_custom_call.1} parent=1 // pred_check
      _
    $region11: #{tpu_custom_call.1} parent=1 // pred_check_branch
      %24 = sbr.rel (0) target = $region13
    $region12: #{tpu_custom_call.1} parent=1 // pred_region
      _
    $region13: #{tpu_custom_call.1} parent=1 // pred_fallthru
      _
    // Predicated region
    $region14: #{tpu_custom_call.1} parent=1 // pred_check
      _
    $region15: #{tpu_custom_call.1} parent=1 // pred_check_branch
      %26 = sbr.rel (0) target = $region17
    $region16: #{tpu_custom_call.1} parent=1 // pred_region
      _
    $region17: #{tpu_custom_call.1} parent=1 // pred_fallthru
      _
    // Predicated region
    $region18: #{tpu_custom_call.1} parent=1 // pred_check
      _
    $region19: #{tpu_custom_call.1} parent=1 // pred_check_branch
      %28 = sbr.rel (0) target = $region21
    $region20: #{tpu_custom_call.1} parent=1 // pred_region
      _
    $region21: #{tpu_custom_call.1} parent=1 // pred_fallthru
      _
    // Predicated region
    $region22: #{tpu_custom_call.1} parent=1 // pred_check
      _
    $region23: #{tpu_custom_call.1} parent=1 // pred_check_branch
      %30 = sbr.rel (0) target = $region25
    $region24: #{tpu_custom_call.1} parent=1 // pred_region
      _
    $region25: #{tpu_custom_call.1} parent=1 // pred_fallthru
      _
    // Predicated region
    $region26: #{tpu_custom_call.1} parent=1 // pred_check
      _
    $region27: #{tpu_custom_call.1} parent=1 // pred_check_branch
      %32 = sbr.rel (0) target = $region29
    $region28: #{tpu_custom_call.1} parent=1 // pred_region
      _
    $region29: #{tpu_custom_call.1} parent=1 // pred_fallthru
      _
    // Predicated region
    $region30: #{tpu_custom_call.1} parent=1 // pred_check
      _
    $region31: #{tpu_custom_call.1} parent=1 // pred_check_branch
      %34 = sbr.rel (0) target = $region33
    $region32: #{tpu_custom_call.1} parent=1 // pred_region
      _
    $region33: #{tpu_custom_call.1} parent=1 // pred_fallthru
      _
    // Predicated region
    $region34: #{tpu_custom_call.1} parent=1 // pred_check
      _
    $region35: #{tpu_custom_call.1} parent=1 // pred_check_branch
      %36 = sbr.rel (0) target = $region37
    $region36: #{tpu_custom_call.1} parent=1 // pred_region
      _
    $region37: #{tpu_custom_call.1} parent=1 // pred_fallthru
      _
    %p37 = scmp.eq.s32.totalorder 0, 0
    // Predicated region
    $region38: #{tpu_custom_call.1} parent=1 // pred_check
      %p38 = pneg %p37
    $region39: #{tpu_custom_call.1} parent=1 // pred_check_branch
      %40 = sbr.rel (%p38) target = $region41
    $region40: #{tpu_custom_call.1} parent=1 // pred_region
      %v41 = vld [vmem:[%s2] sm:$0xff]
      %vm42 = vcmask 261120
      %43 = vst.msk [vmem:[#allocation2] sm:$0xff] %vm42, %v41
      %v44 = vld [vmem:[%s3] sm:$0xff]
      %45 = vst.msk [vmem:[#allocation3] sm:$0xff] %vm42, %v44
    $region41: #{tpu_custom_call.1} parent=1 // pred_fallthru
      _
    %s46 = smul.u32 0, 8
    %s47 = scalar_lea.vmem %s0, %s46
    %v48 = vld [vmem:[%s47] sm:$0xff]
    %v49 = vlaneseq
    %v50 = vand.u32 %v49, 127
    %51 = vset.pattern.permute.xlu0 0
    %52 = vperm.xlu0 %51, %v48
    %v53 = vpop.permute.xlu0 %52
    %vm54 = vcmp.eq.s32.totalorder %v53, %v50
    %v55 = vsel %vm54, 1, 0
    %v56 = vcvt.s32.f32 %v55
    %v57 = vld [vmem:[%s1] sm:$0xff]
    %v58 = vld [vmem:[%s1 + $0x8] sm:$0xff]
    %v59 = vld [vmem:[%s1 + $0x10] sm:$0xff]
    %v60 = vld [vmem:[%s1 + $0x18] sm:$0xff]
    %v61 = vld [vmem:[%s1 + $0x20] sm:$0xff]
    %v62 = vld [vmem:[%s1 + $0x28] sm:$0xff]
    %v63 = vld [vmem:[%s1 + $0x30] sm:$0xff]
    %v64 = vld [vmem:[%s1 + $0x38] sm:$0xff]
    %v65 = vld [vmem:[%s1 + $0x40] sm:$0xff]
    %v66 = vld [vmem:[%s1 + $0x48] sm:$0xff]
    %v67 = vld [vmem:[%s1 + $0x50] sm:$0xff]
    %v68 = vld [vmem:[%s1 + $0x58] sm:$0xff]
    %v69 = vld [vmem:[%s1 + $0x60] sm:$0xff]
    %v70 = vld [vmem:[%s1 + $0x68] sm:$0xff]
    %v71 = vld [vmem:[%s1 + $0x70] sm:$0xff]
    %v72 = vld [vmem:[%s1 + $0x78] sm:$0xff]
    %73 = vmatprep.subr.mxu0 0.0
    %74 = vmatpush1.msra.mxu0 %v72
    %75 = vmatprep.subr.mxu0 0.0
    %76 = vmatpush1.msra.mxu0 %v71
    %77 = vmatprep.subr.mxu0 0.0
    %78 = vmatpush1.msra.mxu0 %v70
    %79 = vmatprep.subr.mxu0 0.0
    %80 = vmatpush1.msra.mxu0 %v69
    %81 = vmatprep.subr.mxu0 0.0
    %82 = vmatpush1.msra.mxu0 %v68
    %83 = vmatprep.subr.mxu0 0.0
    %84 = vmatpush1.msra.mxu0 %v67
    %85 = vmatprep.subr.mxu0 0.0
    %86 = vmatpush1.msra.mxu0 %v66
    %87 = vmatprep.subr.mxu0 0.0
    %88 = vmatpush1.msra.mxu0 %v65
    %89 = vmatprep.subr.mxu0 0.0
    %90 = vmatpush1.msra.mxu0 %v64
    %91 = vmatprep.subr.mxu0 0.0
    %92 = vmatpush1.msra.mxu0 %v63
    %93 = vmatprep.subr.mxu0 0.0
    %94 = vmatpush1.msra.mxu0 %v62
    %95 = vmatprep.subr.mxu0 0.0
    %96 = vmatpush1.msra.mxu0 %v61
    %97 = vmatprep.subr.mxu0 0.0
    %98 = vmatpush1.msra.mxu0 %v60
    %99 = vmatprep.subr.mxu0 0.0
    %100 = vmatpush1.msra.mxu0 %v59
    %101 = vmatprep.subr.mxu0 0.0
    %102 = vmatpush1.msra.mxu0 %v58
    %103 = vmatprep.subr.mxu0 0.0
    %104 = vmatpush1.msra.mxu0 %v57
    %105 = vmatprep.subr.mxu0 0.0
    %106 = vmatpush2.msra.mxu0 0.0
    %107 = vmatprep.subr.mxu0 0.0
    %108 = vmatpush2.msra.mxu0 0.0
    %109 = vmatprep.subr.mxu0 0.0
    %110 = vmatpush2.msra.mxu0 0.0
    %111 = vmatprep.subr.mxu0 0.0
    %112 = vmatpush2.msra.mxu0 0.0
    %113 = vmatprep.subr.mxu0 0.0
    %114 = vmatpush2.msra.mxu0 0.0
    %115 = vmatprep.subr.mxu0 0.0
    %116 = vmatpush2.msra.mxu0 0.0
    %117 = vmatprep.subr.mxu0 0.0
    %118 = vmatpush2.msra.mxu0 0.0
    %119 = vmatprep.subr.mxu0 0.0
    %120 = vmatpush2.msra.mxu0 0.0
    %121 = vmatprep.subr.mxu0 0.0
    %122 = vmatpush2.msra.mxu0 0.0
    %123 = vmatprep.subr.mxu0 0.0
    %124 = vmatpush2.msra.mxu0 0.0
    %125 = vmatprep.subr.mxu0 0.0
    %126 = vmatpush2.msra.mxu0 0.0
    %127 = vmatprep.subr.mxu0 0.0
    %128 = vmatpush2.msra.mxu0 0.0
    %129 = vmatprep.subr.mxu0 0.0
    %130 = vmatpush2.msra.mxu0 0.0
    %131 = vmatprep.subr.mxu0 0.0
    %132 = vmatpush2.msra.mxu0 0.0
    %133 = vmatprep.subr.mxu0 0.0
    %134 = vmatpush2.msra.mxu0 0.0
    %135 = vmatprep.subr.mxu0 0.0
    %136 = vmatpush2.msra.mxu0 0.0
    %137 = vmatprep.mubr.f32.mxu0 0.0
    %138 = vmatmul.mubr.f32.gmra.mxu0 %v56
    %v139 = vpop.f32.mrf.mxu0
    %v140 = vadd.f32 0.0, %v139
    %v141 = vpop.f32.mrf.mxu0
    %142 = vdwg.mxu0
    %v143 = vld [vmem:[#allocation2] sm:$0xff]
    %v144 = vld [vmem:[#allocation3] sm:$0xff]
    %v145 = vld [vmem:[%s4] sm:$0xff]
    %v146 = vld [vmem:[%s4 + $0x8] sm:$0xff]
    %v147 = vld [vmem:[%s4 + $0x10] sm:$0xff]
    %v148 = vld [vmem:[%s4 + $0x18] sm:$0xff]
    %v149 = vld [vmem:[%s5] sm:$0xff]
    %v150 = vld [vmem:[%s5 + $0x8] sm:$0xff]
    %v151 = vld [vmem:[%s5 + $0x10] sm:$0xff]
    %v152 = vld [vmem:[%s5 + $0x18] sm:$0xff]
    %vm153 = vcmask 261120
    %v155 = vsel %vm153, %v143, 0
    %157 = vmatprep.subr.mxu0 0.0
    %158 = vmatpush1.msra.mxu0 0.0
    %159 = vmatprep.subr.mxu0 0.0
    %160 = vmatpush1.msra.mxu0 0.0
    %161 = vmatprep.subr.mxu0 0.0
    %162 = vmatpush1.msra.mxu0 0.0
    %163 = vmatprep.subr.mxu0 0.0
    %164 = vmatpush1.msra.mxu0 0.0
    %165 = vmatprep.subr.mxu0 0.0
    %166 = vmatpush1.msra.mxu0 0.0
    %167 = vmatprep.subr.mxu0 0.0
    %168 = vmatpush1.msra.mxu0 0.0
    %169 = vmatprep.subr.mxu0 0.0
    %170 = vmatpush1.msra.mxu0 0.0
    %171 = vmatprep.subr.mxu0 0.0
    %172 = vmatpush1.msra.mxu0 0.0
    %173 = vmatprep.subr.mxu0 0.0
    %174 = vmatpush1.msra.mxu0 0.0
    %175 = vmatprep.subr.mxu0 0.0
    %176 = vmatpush1.msra.mxu0 0.0
    %177 = vmatprep.subr.mxu0 0.0
    %178 = vmatpush1.msra.mxu0 0.0
    %179 = vmatprep.subr.mxu0 0.0
    %180 = vmatpush1.msra.mxu0 0.0
    %181 = vmatprep.subr.mxu0 0.0
    %182 = vmatpush1.msra.mxu0 %v152
    %183 = vmatprep.subr.mxu0 0.0
    %184 = vmatpush1.msra.mxu0 %v151
    %185 = vmatprep.subr.mxu0 0.0
    %186 = vmatpush1.msra.mxu0 %v150
    %187 = vmatprep.subr.mxu0 0.0
    %188 = vmatpush1.msra.mxu0 %v149
    %189 = vmatprep.subr.mxu0 0.0
    %190 = vmatpush2.msra.mxu0 0.0
    %191 = vmatprep.subr.mxu0 0.0
    %192 = vmatpush2.msra.mxu0 0.0
    %193 = vmatprep.subr.mxu0 0.0
    %194 = vmatpush2.msra.mxu0 0.0
    %195 = vmatprep.subr.mxu0 0.0
    %196 = vmatpush2.msra.mxu0 0.0
    %197 = vmatprep.subr.mxu0 0.0
    %198 = vmatpush2.msra.mxu0 0.0
    %199 = vmatprep.subr.mxu0 0.0
    %200 = vmatpush2.msra.mxu0 0.0
    %201 = vmatprep.subr.mxu0 0.0
    %202 = vmatpush2.msra.mxu0 0.0
    %203 = vmatprep.subr.mxu0 0.0
    %204 = vmatpush2.msra.mxu0 0.0
    %205 = vmatprep.subr.mxu0 0.0
    %206 = vmatpush2.msra.mxu0 0.0
    %207 = vmatprep.subr.mxu0 0.0
    %208 = vmatpush2.msra.mxu0 0.0
    %209 = vmatprep.subr.mxu0 0.0
    %210 = vmatpush2.msra.mxu0 0.0
    %211 = vmatprep.subr.mxu0 0.0
    %212 = vmatpush2.msra.mxu0 0.0
    %213 = vmatprep.subr.mxu0 0.0
    %214 = vmatpush2.msra.mxu0 0.0
    %215 = vmatprep.subr.mxu0 0.0
    %216 = vmatpush2.msra.mxu0 0.0
    %217 = vmatprep.subr.mxu0 0.0
    %218 = vmatpush2.msra.mxu0 0.0
    %219 = vmatprep.subr.mxu0 0.0
    %220 = vmatpush2.msra.mxu0 0.0
    %221 = vmatprep.mubr.f32.mxu0 0.0
    %222 = vmatmul.mubr.f32.gmra.mxu0 %v155
    %v223 = vpop.f32.mrf.mxu0
    %v224 = vadd.f32 0.0, %v223
    %v225 = vpop.f32.mrf.mxu0
    %226 = vdwg.mxu0
    %v228 = vsel %vm153, %v140, 0
    %230 = vmatprep.subr.mxu0 0.0
    %231 = vmatpush1.msra.mxu0 0.0
    %232 = vmatprep.subr.mxu0 0.0
    %233 = vmatpush1.msra.mxu0 0.0
    %234 = vmatprep.subr.mxu0 0.0
    %235 = vmatpush1.msra.mxu0 0.0
    %236 = vmatprep.subr.mxu0 0.0
    %237 = vmatpush1.msra.mxu0 0.0
    %238 = vmatprep.subr.mxu0 0.0
    %239 = vmatpush1.msra.mxu0 0.0
    %240 = vmatprep.subr.mxu0 0.0
    %241 = vmatpush1.msra.mxu0 0.0
    %242 = vmatprep.subr.mxu0 0.0
    %243 = vmatpush1.msra.mxu0 0.0
    %244 = vmatprep.subr.mxu0 0.0
    %245 = vmatpush1.msra.mxu0 0.0
    %246 = vmatprep.subr.mxu0 0.0
    %247 = vmatpush1.msra.mxu0 0.0
    %248 = vmatprep.subr.mxu0 0.0
    %249 = vmatpush1.msra.mxu0 0.0
    %250 = vmatprep.subr.mxu0 0.0
    %251 = vmatpush1.msra.mxu0 0.0
    %252 = vmatprep.subr.mxu0 0.0
    %253 = vmatpush1.msra.mxu0 0.0
    %254 = vmatprep.subr.mxu0 0.0
    %255 = vmatpush1.msra.mxu0 %v148
    %256 = vmatprep.subr.mxu0 0.0
    %257 = vmatpush1.msra.mxu0 %v147
    %258 = vmatprep.subr.mxu0 0.0
    %259 = vmatpush1.msra.mxu0 %v146
    %260 = vmatprep.subr.mxu0 0.0
    %261 = vmatpush1.msra.mxu0 %v145
    %262 = vmatprep.subr.mxu0 0.0
    %263 = vmatpush2.msra.mxu0 0.0
    %264 = vmatprep.subr.mxu0 0.0
    %265 = vmatpush2.msra.mxu0 0.0
    %266 = vmatprep.subr.mxu0 0.0
    %267 = vmatpush2.msra.mxu0 0.0
    %268 = vmatprep.subr.mxu0 0.0
    %269 = vmatpush2.msra.mxu0 0.0
    %270 = vmatprep.subr.mxu0 0.0
    %271 = vmatpush2.msra.mxu0 0.0
    %272 = vmatprep.subr.mxu0 0.0
    %273 = vmatpush2.msra.mxu0 0.0
    %274 = vmatprep.subr.mxu0 0.0
    %275 = vmatpush2.msra.mxu0 0.0
    %276 = vmatprep.subr.mxu0 0.0
    %277 = vmatpush2.msra.mxu0 0.0
    %278 = vmatprep.subr.mxu0 0.0
    %279 = vmatpush2.msra.mxu0 0.0
    %280 = vmatprep.subr.mxu0 0.0
    %281 = vmatpush2.msra.mxu0 0.0
    %282 = vmatprep.subr.mxu0 0.0
    %283 = vmatpush2.msra.mxu0 0.0
    %284 = vmatprep.subr.mxu0 0.0
    %285 = vmatpush2.msra.mxu0 0.0
    %286 = vmatprep.subr.mxu0 0.0
    %287 = vmatpush2.msra.mxu0 0.0
    %288 = vmatprep.subr.mxu0 0.0
    %289 = vmatpush2.msra.mxu0 0.0
    %290 = vmatprep.subr.mxu0 0.0
    %291 = vmatpush2.msra.mxu0 0.0
    %292 = vmatprep.subr.mxu0 0.0
    %293 = vmatpush2.msra.mxu0 0.0
    %294 = vmatprep.mubr.f32.mxu0 0.0
    %295 = vmatmul.mubr.f32.gmra.mxu0 %v228
    %v296 = vpop.f32.mrf.mxu0
    %v297 = vadd.f32 %v224, %v296
    %v298 = vpop.f32.mrf.mxu0
    %299 = vdwg.mxu0
    %v300 = vld [vmem:[%s6] sm:$0x1]
    %v302 = vlaneseq
    %v303 = vshrl.u32 %v302, 7
    %v304 = vsub.s32 0, %v303
    %v305 = vrot.slane %v300, %v304
    %v307 = vadd.f32 %v297, %v305
    %v308 = vxor.u32 %v307, 2147483648
    %v309 = vmul.f32 %v308, 1.442695
    %v310 = vpow.pop %v309
    %v311 = vadd.f32 %v310, 1.0
    %v312 = vrcp.pop %v311
    %v313 = vmul.f32 1.0, %v312
    %v314 = vtanh.pop %v307
    %316 = vrot.lane.b32.xlu0 %v144, 32
    %v317 = vpop.permute.xlu0 %316
    %v319 = vmul.f32 %v313, %v317
    %321 = vrot.lane.b32.xlu0 %v314, 64
    %v322 = vpop.permute.xlu0 %321
    %v324 = vmul.f32 %v313, %v322
    %326 = vrot.lane.b32.xlu0 %v324, 32
    %v327 = vpop.permute.xlu0 %326
    %v329 = vadd.f32 %v319, %v327
    %v330 = vtanh.pop %v329
    %332 = vrot.lane.b32.xlu0 %v330, 64
    %v333 = vpop.permute.xlu0 %332
    %v335 = vmul.f32 %v313, %v333
    %337 = vrot.lane.b32.xlu0 %v335, 32
    %v338 = vpop.permute.xlu0 %337
    %340 = vst.msk [vmem:[#allocation2] sm:$0xff] %vm153, %v338
    %342 = vrot.lane.b32.xlu0 %v329, 96
    %v343 = vpop.permute.xlu0 %342
    %345 = vst.msk [vmem:[#allocation3] sm:$0xff] %vm153, %v343
    %v346 = vmax.f32 %v335, 0.0
    %v347 = vld [vmem:[%s7] sm:$0xff]
    %v348 = vld [vmem:[%s7 + $0x8] sm:$0xff]
    %v349 = vld [vmem:[%s7 + $0x10] sm:$0xff]
    %v350 = vld [vmem:[%s7 + $0x18] sm:$0xff]
    %v351 = vld [vmem:[%s8] sm:$0x1]
    %v353 = vlaneseq
    %v354 = vshrl.u32 %v353, 7
    %v355 = vsub.s32 0, %v354
    %v356 = vrot.slane %v351, %v355
    %359 = vrot.lane.b32.xlu0 %v346, 32
    %v360 = vpop.permute.xlu0 %359
    %v361 = vsel %vm153, %v360, 0
    %363 = vmatprep.subr.mxu0 0.0
    %364 = vmatpush1.msra.mxu0 0.0
    %365 = vmatprep.subr.mxu0 0.0
    %366 = vmatpush1.msra.mxu0 0.0
    %367 = vmatprep.subr.mxu0 0.0
    %368 = vmatpush1.msra.mxu0 0.0
    %369 = vmatprep.subr.mxu0 0.0
    %370 = vmatpush1.msra.mxu0 0.0
    %371 = vmatprep.subr.mxu0 0.0
    %372 = vmatpush1.msra.mxu0 0.0
    %373 = vmatprep.subr.mxu0 0.0
    %374 = vmatpush1.msra.mxu0 0.0
    %375 = vmatprep.subr.mxu0 0.0
    %376 = vmatpush1.msra.mxu0 0.0
    %377 = vmatprep.subr.mxu0 0.0
    %378 = vmatpush1.msra.mxu0 0.0
    %379 = vmatprep.subr.mxu0 0.0
    %380 = vmatpush1.msra.mxu0 0.0
    %381 = vmatprep.subr.mxu0 0.0
    %382 = vmatpush1.msra.mxu0 0.0
    %383 = vmatprep.subr.mxu0 0.0
    %384 = vmatpush1.msra.mxu0 0.0
    %385 = vmatprep.subr.mxu0 0.0
    %386 = vmatpush1.msra.mxu0 0.0
    %387 = vmatprep.subr.mxu0 0.0
    %388 = vmatpush1.msra.mxu0 %v350
    %389 = vmatprep.subr.mxu0 0.0
    %390 = vmatpush1.msra.mxu0 %v349
    %391 = vmatprep.subr.mxu0 0.0
    %392 = vmatpush1.msra.mxu0 %v348
    %393 = vmatprep.subr.mxu0 0.0
    %394 = vmatpush1.msra.mxu0 %v347
    %395 = vmatprep.subr.mxu0 0.0
    %396 = vmatpush2.msra.mxu0 0.0
    %397 = vmatprep.subr.mxu0 0.0
    %398 = vmatpush2.msra.mxu0 0.0
    %399 = vmatprep.subr.mxu0 0.0
    %400 = vmatpush2.msra.mxu0 0.0
    %401 = vmatprep.subr.mxu0 0.0
    %402 = vmatpush2.msra.mxu0 0.0
    %403 = vmatprep.subr.mxu0 0.0
    %404 = vmatpush2.msra.mxu0 0.0
    %405 = vmatprep.subr.mxu0 0.0
    %406 = vmatpush2.msra.mxu0 0.0
    %407 = vmatprep.subr.mxu0 0.0
    %408 = vmatpush2.msra.mxu0 0.0
    %409 = vmatprep.subr.mxu0 0.0
    %410 = vmatpush2.msra.mxu0 0.0
    %411 = vmatprep.subr.mxu0 0.0
    %412 = vmatpush2.msra.mxu0 0.0
    %413 = vmatprep.subr.mxu0 0.0
    %414 = vmatpush2.msra.mxu0 0.0
    %415 = vmatprep.subr.mxu0 0.0
    %416 = vmatpush2.msra.mxu0 0.0
    %417 = vmatprep.subr.mxu0 0.0
    %418 = vmatpush2.msra.mxu0 0.0
    %419 = vmatprep.subr.mxu0 0.0
    %420 = vmatpush2.msra.mxu0 0.0
    %421 = vmatprep.subr.mxu0 0.0
    %422 = vmatpush2.msra.mxu0 0.0
    %423 = vmatprep.subr.mxu0 0.0
    %424 = vmatpush2.msra.mxu0 0.0
    %425 = vmatprep.subr.mxu0 0.0
    %426 = vmatpush2.msra.mxu0 0.0
    %427 = vmatprep.mubr.f32.mxu0 0.0
    %428 = vmatmul.mubr.f32.gmra.mxu0 %v361
    %v429 = vpop.f32.mrf.mxu0
    %v430 = vadd.f32 %v356, %v429
    %v431 = vpop.f32.mrf.mxu0
    %432 = vdwg.mxu0
    %433 = vst [vmem:[#allocation4] sm:$0xff] %v430
    // Predicated region
    $region42: #{tpu_custom_call.1} parent=1 // pred_check
      %p434 = pneg %p37
    $region43: #{tpu_custom_call.1} parent=1 // pred_check_branch
      %436 = sbr.rel (%p434) target = $region45
    $region44: #{tpu_custom_call.1} parent=1 // pred_region
      %437 = vst.msk [vmem:[#allocation6] sm:$0xff] %vm153, %v338
      %438 = vst.msk [vmem:[#allocation8] sm:$0xff] %vm153, %v343
    $region45: #{tpu_custom_call.1} parent=1 // pred_fallthru
      _
    // Predicated region
    $region46: #{tpu_custom_call.1} parent=1 // pred_check
      _
    $region47: #{tpu_custom_call.1} parent=1 // pred_check_branch
      %440 = sbr.rel (0) target = $region49
    $region48: #{tpu_custom_call.1} parent=1 // pred_region
      %s442 = ssub.s32 128, 128
      %443 = vsyncadd [#allocation5], %s442
      %s445 = sshll.u32 [#allocation4], 4
      %s446 = int_to_ptr.vmem [resolvable:$true] %s445
      %448 = dma.vmem_to_hbm [thread:$0]  %s446, 128, %s9, [#allocation5]
    $region49: #{tpu_custom_call.1} parent=1 // pred_fallthru
      _
    // Predicated region
    $region50: #{tpu_custom_call.1} parent=1 // pred_check
      _
    $region51: #{tpu_custom_call.1} parent=1 // pred_check_branch
      %450 = sbr.rel (0) target = $region53
    $region52: #{tpu_custom_call.1} parent=1 // pred_region
      %s452 = ssub.s32 128, 128
      %453 = vsyncadd [#allocation7], %s452
      %s455 = sshll.u32 [#allocation6], 4
      %s456 = int_to_ptr.vmem [resolvable:$true] %s455
      %458 = dma.vmem_to_hbm [thread:$0]  %s456, 128, %s10, [#allocation7]
    $region53: #{tpu_custom_call.1} parent=1 // pred_fallthru
      _
    // Predicated region
    $region54: #{tpu_custom_call.1} parent=1 // pred_check
      _
    $region55: #{tpu_custom_call.1} parent=1 // pred_check_branch
      %460 = sbr.rel (0) target = $region57
    $region56: #{tpu_custom_call.1} parent=1 // pred_region
      %s462 = ssub.s32 128, 128
      %463 = vsyncadd [#allocation7], %s462
      %s465 = sshll.u32 [#allocation8], 4
      %s466 = int_to_ptr.vmem [resolvable:$true] %s465
      %468 = dma.vmem_to_hbm [thread:$0]  %s466, 128, %s11, [#allocation7]
    $region57: #{tpu_custom_call.1} parent=1 // pred_fallthru
      _
    // Predicated region
    $region58: #{tpu_custom_call.1} parent=1 // pred_check
      _
    $region59: #{tpu_custom_call.1} parent=1 // pred_check_branch
      %470 = sbr.rel (0) target = $region61
    $region60: #{tpu_custom_call.1} parent=1 // pred_region
      %471 = dma.done [#allocation5], 128
    $region61: #{tpu_custom_call.1} parent=1 // pred_fallthru
      _
    // Predicated region
    $region62: #{tpu_custom_call.1} parent=1 // pred_check
      _
    $region63: #{tpu_custom_call.1} parent=1 // pred_check_branch
      %473 = sbr.rel (0) target = $region65
    $region64: #{tpu_custom_call.1} parent=1 // pred_region
      %474 = dma.done [#allocation7], 128
    $region65: #{tpu_custom_call.1} parent=1 // pred_fallthru
      _
    // Predicated region
    $region66: #{tpu_custom_call.1} parent=1 // pred_check
      _
    $region67: #{tpu_custom_call.1} parent=1 // pred_check_branch
      %476 = sbr.rel (0) target = $region69
    $region68: #{tpu_custom_call.1} parent=1 // pred_region
      %477 = dma.done [#allocation7], 128
    $region69: #{tpu_custom_call.1} parent=1 // pred_fallthru
      _
    %478 = vsyncpa [#allocation5], 1
    %479 = vsyncpa [#allocation7], 1

</llo_original>
